<compile_context>
chip_gen: v7x
topology: tpu7x:2x2x1
jax: 0.10.0
libtpu: 0.0.40
codegen_flags: <defaults>
</compile_context>

<pallas_src>
import functools

import jax
import jax.numpy as jnp
from jax.experimental import pallas as pl
from jax.experimental.pallas import tpu as pltpu

_EPS = 1e-10


def _cdiv(a, b):
    return (a + b - 1) // b


def _clamp_consts(nc, sm):
    # torch.clamp(x, lo, hi) == min(max(x, lo), hi); this matches for any sm
    # (including the degenerate lo > hi case, where both collapse to hi).
    lo = sm / (nc - 1)
    hi = 1.0 - sm
    hot = min(max(1.0, lo), hi)
    cold = min(max(0.0, lo), hi)
    return float(hot), float(cold)


def _tile_loss(logits, labels, *, class_axis, hot, cold, gm):
    """Per-sample focal-smooth loss for one tile.

    logits: [R, C] f32; labels: int32 broadcastable against logits along
    class_axis.  Returns the per-sample loss with class_axis reduced to 1.
    """
    m = jnp.max(logits, axis=class_axis, keepdims=True)
    e = jnp.exp(logits - m)
    denom = jnp.sum(e, axis=class_axis, keepdims=True)
    cls = jax.lax.broadcasted_iota(jnp.int32, logits.shape, class_axis)
    sel = jnp.sum(jnp.where(cls == labels, e, 0.0),
                  axis=class_axis, keepdims=True)
    # Per-sample EUP reciprocal + one Newton step (full f32 accuracy) instead
    # of a [R, C] elementwise divide.
    r = pl.reciprocal(denom, approx=True)
    r = r * (2.0 - denom * r)
    p_label = sel * r
    # one_hot is `hot` at the label and `cold` elsewhere, and sum(p) == 1, so
    #   pt = sum(one_hot * p) = (hot - cold) * p_label + cold.
    pt = (hot - cold) * p_label + cold + _EPS
    logpt = jnp.log(pt)
    if gm == 0.0:
        return -logpt
    if float(gm).is_integer() and 1 <= int(gm) <= 3:
        base = 1.0 - pt
        w = base
        for _ in range(int(gm) - 1):
            w = w * base
        return -w * logpt
    return -jnp.power(1.0 - pt, gm) * logpt


def _kernel_batch_rows(logits_ref, labels_ref, out_ref, *,
                       hot, cold, gm, b, tb, t_per_p):
    """Layout for nc >= 128: logits [tb, nc] (classes on lanes), labels [tb, 1]."""
    i = pl.program_id(1)

    @pl.when(i == 0)
    def _():
        out_ref[...] = jnp.zeros_like(out_ref)

    step = pl.program_id(0) * t_per_p + i
    logits = logits_ref[...].astype(jnp.float32)
    loss = _tile_loss(logits, labels_ref[...], class_axis=1,
                      hot=hot, cold=cold, gm=gm)                  # [tb, 1]
    rows = step * tb + jax.lax.broadcasted_iota(jnp.int32, loss.shape, 0)
    loss = jnp.where(rows < b, loss, 0.0)                         # ragged/oob rows
    out_ref[...] += jnp.sum(loss)


def _kernel_batch_lanes(logits_ref, labels_ref, out_ref, *,
                        hot, cold, gm, b, tb, t_per_p):
    """Lane-dense layout for nc < 128: logits [nc, tb] (batch on lanes), labels [1, tb]."""
    i = pl.program_id(1)

    @pl.when(i == 0)
    def _():
        out_ref[...] = jnp.zeros_like(out_ref)

    step = pl.program_id(0) * t_per_p + i
    logits = logits_ref[...].astype(jnp.float32)
    loss = _tile_loss(logits, labels_ref[...], class_axis=0,
                      hot=hot, cold=cold, gm=gm)                  # [1, tb]
    cols = step * tb + jax.lax.broadcasted_iota(jnp.int32, loss.shape, 1)
    loss = jnp.where(cols < b, loss, 0.0)                         # ragged/oob cols
    out_ref[...] += jnp.sum(loss)


def focal_smooth_loss(yhat, y, *, nc, sm=0.0, gm=0.0, tile_bytes=None):
    """yhat: [B, nc] float logits; y: [B] int labels. Returns scalar mean loss."""
    b, c = yhat.shape
    assert c == nc and nc > 1

    if not jnp.issubdtype(yhat.dtype, jnp.floating):
        yhat = yhat.astype(jnp.float32)
    itemsize = jnp.dtype(yhat.dtype).itemsize       # stream the native dtype
    labels = y.astype(jnp.int32)
    hot, cold = _clamp_consts(nc, float(sm))
    gm = float(gm)

    # ---- tile sizing: multi-MiB logits tiles, capped by this chip's VMEM ----
    try:
        vmem_cap = int(pltpu.get_tpu_info().vmem_capacity_bytes)
    except Exception:                               # conservative (v7x per-core)
        vmem_cap = 64 << 20
    if tile_bytes is None:
        tile_bytes = 4 << 20
    tile_bytes = max(1, min(int(tile_bytes), vmem_cap // 32))

    lane_dense = nc < 128
    if lane_dense:
        mult = 128                                  # batch on the 128-lane axis
        per_sample = nc * itemsize + 4
    else:
        mult = max(8, 32 // itemsize)               # 8 rows f32 / 16 bf16 / 32 i8
        per_sample = nc * itemsize + 512            # + lane-padded label row
    tb = max(mult, (tile_bytes // per_sample) // mult * mult)
    if tb >= b:
        tb = b                                      # single tile == full batch (always legal)

    num_tiles = _cdiv(b, tb)
    p_axis = 2 if num_tiles >= 2 else 1             # megacore split (v7x has 2 TCs)
    t_per_p = _cdiv(num_tiles, p_axis)
    last_tile = num_tiles - 1

    if lane_dense:
        # One extra XLA transpose pass; pays for 128/nc lane utilisation and a
        # contiguous lane-dense DMA in the kernel.
        logits_in = yhat.T                          # [nc, B]
        labels_in = labels.reshape(1, b)            # [1, B]
        logits_spec = pl.BlockSpec(
            (nc, tb), lambda p, i: (0, jnp.minimum(p * t_per_p + i, last_tile)))
        labels_spec = pl.BlockSpec(
            (1, tb), lambda p, i: (0, jnp.minimum(p * t_per_p + i, last_tile)))
        kernel = functools.partial(_kernel_batch_lanes, hot=hot, cold=cold,
                                   gm=gm, b=b, tb=tb, t_per_p=t_per_p)
        labels_block_vmem = 8 * tb * 4
    else:
        logits_in = yhat                            # [B, nc]
        labels_in = labels.reshape(b, 1)            # [B, 1]
        logits_spec = pl.BlockSpec(
            (tb, nc), lambda p, i: (jnp.minimum(p * t_per_p + i, last_tile), 0))
        labels_spec = pl.BlockSpec(
            (tb, 1), lambda p, i: (jnp.minimum(p * t_per_p + i, last_tile), 0))
        kernel = functools.partial(_kernel_batch_rows, hot=hot, cold=cold,
                                   gm=gm, b=b, tb=tb, t_per_p=t_per_p)
        labels_block_vmem = tb * 128 * 4

    out_spec = pl.BlockSpec((1, 128), lambda p, i: (0, p))   # per-core partials

    logits_block_vmem = tb * nc * itemsize
    f32_tile = tb * nc * 4
    vmem_need = 2 * (logits_block_vmem + labels_block_vmem) + 6 * f32_tile + (4 << 20)
    vmem_limit = int(min(vmem_cap * 3 // 4, max(vmem_need, 32 << 20)))

    cost = pl.CostEstimate(
        flops=int(b * (7 * nc + 24)),
        transcendentals=int(b * (nc + 3)),
        bytes_accessed=int(b * nc * itemsize + b * 4 + p_axis * 128 * 4),
    )

    out = pl.pallas_call(
        kernel,
        out_shape=jax.ShapeDtypeStruct((1, p_axis * 128), jnp.float32),
        grid_spec=pltpu.PrefetchScalarGridSpec(
            num_scalar_prefetch=0,
            grid=(p_axis, t_per_p),
            in_specs=[logits_spec, labels_spec],
            out_specs=out_spec,
        ),
        compiler_params=pltpu.CompilerParams(
            dimension_semantics=("parallel", "arbitrary"),
            vmem_limit_bytes=vmem_limit,
        ),
        cost_estimate=cost,
    )(logits_in, labels_in)

    # Each (1,128) block holds one core's partial sum broadcast across lanes.
    partials = out[0, ::128]
    return jnp.sum(partials) * (1.0 / b)


def _reference(yhat, y, *, nc, sm=0.0, gm=0.0):
    """Plain-JAX reference of the same forward (for correctness checks)."""
    p = jax.nn.softmax(yhat.astype(jnp.float32), axis=1)
    one_hot = jax.nn.one_hot(y, nc, dtype=jnp.float32)
    one_hot = jnp.clip(one_hot, sm / (nc - 1), 1.0 - sm)
    pt = jnp.sum(one_hot * p, axis=1) + _EPS
    logpt = jnp.log(pt)
    loss = -jnp.power(1.0 - pt, gm) * logpt
    return jnp.mean(loss)


if __name__ == "__main__":
    key = jax.random.PRNGKey(0)
    ks = jax.random.split(key, 10)

    def check(yhat, y, *, nc, sm, gm, tol=1e-4, **kw):
        out = jax.block_until_ready(
            focal_smooth_loss(yhat, y, nc=nc, sm=sm, gm=gm, **kw))
        ref = _reference(yhat.astype(jnp.float32), y, nc=nc, sm=sm, gm=gm)
        assert out.shape == ()
        assert jnp.allclose(out, ref, atol=tol, rtol=tol), (sm, gm, out, ref)

    # 1) Plain cross-entropy (sm=0, gm=0); small nc -> lane-dense path.
    NC = 8
    yh = jax.random.normal(ks[0], (16, NC), jnp.float32)
    yy = jax.random.randint(ks[1], (16,), 0, NC)
    check(yh, yy, nc=NC, sm=0.0, gm=0.0)

    # 2) Label smoothing + focal gm=2, ragged batch.
    yh = 2.0 * jax.random.normal(ks[2], (10, NC), jnp.float32)
    yy = jax.random.randint(ks[3], (10,), 0, NC)
    check(yh, yy, nc=NC, sm=0.1, gm=2.0)

    # 3) Wide class count -> classes-on-lanes path, non-integer gm.
    NC3 = 128
    yh = jax.random.normal(ks[4], (24, NC3), jnp.float32)
    yy = jax.random.randint(ks[5], (24,), 0, NC3)
    check(yh, yy, nc=NC3, sm=0.05, gm=1.5)

    # 4) Multi-tile + 2-way parallel grid axis (tiny tile forced for the test),
    #    exercises ragged last tile and clamped out-of-range grid steps.
    yh = jax.random.normal(ks[6], (600, NC), jnp.float32)
    yy = jax.random.randint(ks[7], (600,), 0, NC)
    check(yh, yy, nc=NC, sm=0.1, gm=2.0, tile_bytes=4096)

    # 5) Native bf16 streaming (reference sees the same bf16 values upcast).
    yh = jax.random.normal(ks[8], (32, 16), jnp.float32).astype(jnp.bfloat16)
    yy = jax.random.randint(ks[9], (32,), 0, 16)
    check(yh, yy, nc=16, sm=0.05, gm=2.0, tol=2e-3)

    print("KERNEL_OK")
</pallas_src>

<mosaic_0001>
module attributes {stable_mosaic.version = 11 : i64} {
  func.func @_kernel_batch_lanes(%arg0: i32, %arg1: i32, %arg2: memref<8x16xf32, #tpu.memory_space<vmem>>, %arg3: memref<1x16xi32, #tpu.memory_space<vmem>>, %arg4: memref<1x128xf32, #tpu.memory_space<vmem>>) attributes {dimension_semantics = [#tpu.dimension_semantics<parallel>, #tpu.dimension_semantics<arbitrary>], iteration_bounds = array<i64: 1, 1>, scalar_prefetch = 0 : i64, scratch_operands = 0 : i64, tpu.core_type = #tpu.core_type<tc>, window_params = [{transform_indices = @transform_0, window_bounds = array<i64: 8, 16>}, {transform_indices = @transform_1, window_bounds = array<i64: 1, 16>}, {transform_indices = @transform_2, window_bounds = array<i64: 1, 128>}]} {
    %c0_i32 = arith.constant 0 : i32
    %0 = arith.cmpi eq, %arg1, %c0_i32 : i32
    %1 = arith.extui %0 : i1 to i32
    %c0_i32_0 = arith.constant 0 : i32
    %2 = arith.cmpi ne, %1, %c0_i32_0 : i32
    scf.if %2 {
      %cst_19 = arith.constant 0.000000e+00 : f32
      %52 = vector.broadcast %cst_19 : f32 to vector<1x128xf32>
      %c0_20 = arith.constant 0 : index
      %c0_21 = arith.constant 0 : index
      %53 = vector.load %arg4[%c0_20, %c0_21] : memref<1x128xf32, #tpu.memory_space<vmem>>, vector<1x128xf32>
      tpu.vector_store %arg4[%c0_20, %c0_21], %52 {strides = array<i32>} : memref<1x128xf32, #tpu.memory_space<vmem>>, vector<1x128xf32>,
    } else {
    }
    %c1_i32 = arith.constant 1 : i32
    %3 = arith.muli %arg0, %c1_i32 : i32
    %4 = arith.addi %3, %arg1 : i32
    %c0 = arith.constant 0 : index
    %c0_1 = arith.constant 0 : index
    %5 = vector.load %arg2[%c0, %c0_1] : memref<8x16xf32, #tpu.memory_space<vmem>>, vector<8x16xf32>
    %c0_2 = arith.constant 0 : index
    %c0_3 = arith.constant 0 : index
    %6 = vector.load %arg3[%c0_2, %c0_3] : memref<1x16xi32, #tpu.memory_space<vmem>>, vector<1x16xi32>
    %cst = arith.constant dense<0xFF800000> : vector<16xf32>
    %7 = vector.multi_reduction <maximumf>, %5, %cst [0] : vector<8x16xf32> to vector<16xf32>
    %8 = vector.shape_cast %7 : vector<16xf32> to vector<1x16xf32>
    %9 = vector.broadcast %8 : vector<1x16xf32> to vector<8x16xf32>
    %10 = arith.subf %5, %9 : vector<8x16xf32>
    %11 = math.exp %10 : vector<8x16xf32>
    %cst_4 = arith.constant dense<0.000000e+00> : vector<16xf32>
    %12 = vector.multi_reduction <add>, %11, %cst_4 [0] : vector<8x16xf32> to vector<16xf32>
    %13 = vector.shape_cast %12 : vector<16xf32> to vector<1x16xf32>
    %14 = tpu.iota {dimensions = array<i32: 0>} : vector<8x16xi32>
    %15 = vector.broadcast %6 : vector<1x16xi32> to vector<8x16xi32>
    %16 = arith.cmpi eq, %14, %15 : vector<8x16xi32>
    %cst_5 = arith.constant 0.000000e+00 : f32
    %17 = vector.broadcast %cst_5 : f32 to vector<8x16xf32>
    %18 = arith.select %16, %11, %17 : vector<8x16xi1>, vector<8x16xf32>
    %cst_6 = arith.constant dense<0.000000e+00> : vector<16xf32>
    %19 = vector.multi_reduction <add>, %18, %cst_6 [0] : vector<8x16xf32> to vector<16xf32>
    %20 = vector.shape_cast %19 : vector<16xf32> to vector<1x16xf32>
    %21 = tpu.reciprocal %13 {approx = true} : vector<1x16xf32> -> vector<1x16xf32>
    %22 = arith.mulf %13, %21 : vector<1x16xf32>
    %cst_7 = arith.constant 2.000000e+00 : f32
    %23 = vector.broadcast %cst_7 : f32 to vector<1x16xf32>
    %24 = arith.subf %23, %22 : vector<1x16xf32>
    %25 = arith.mulf %21, %24 : vector<1x16xf32>
    %26 = arith.mulf %20, %25 : vector<1x16xf32>
    %cst_8 = arith.constant 1.000000e+00 : f32
    %27 = vector.broadcast %cst_8 : f32 to vector<1x16xf32>
    %28 = arith.mulf %27, %26 : vector<1x16xf32>
    %cst_9 = arith.constant 0.000000e+00 : f32
    %29 = vector.broadcast %cst_9 : f32 to vector<1x16xf32>
    %30 = arith.addf %28, %29 : vector<1x16xf32>
    %cst_10 = arith.constant 1.000000e-10 : f32
    %31 = vector.broadcast %cst_10 : f32 to vector<1x16xf32>
    %32 = arith.addf %30, %31 : vector<1x16xf32>
    %33 = math.log %32 : vector<1x16xf32>
    %cst_11 = arith.constant 0.000000e+00 : f32
    %34 = vector.broadcast %cst_11 : f32 to vector<1x16xf32>
    %35 = arith.subf %34, %33 : vector<1x16xf32>
    %c16_i32 = arith.constant 16 : i32
    %36 = arith.muli %4, %c16_i32 : i32
    %37 = tpu.iota {dimensions = array<i32: 1>} : vector<1x16xi32>
    %38 = vector.broadcast %36 : i32 to vector<1x16xi32>
    %39 = arith.addi %38, %37 : vector<1x16xi32>
    %c16_i32_12 = arith.constant 16 : i32
    %40 = vector.broadcast %c16_i32_12 : i32 to vector<1x16xi32>
    %41 = arith.cmpi slt, %39, %40 : vector<1x16xi32>
    %cst_13 = arith.constant 0.000000e+00 : f32
    %42 = vector.broadcast %cst_13 : f32 to vector<1x16xf32>
    %43 = arith.select %41, %35, %42 : vector<1x16xi1>, vector<1x16xf32>
    %c0_14 = arith.constant 0 : index
    %c0_15 = arith.constant 0 : index
    %44 = vector.load %arg4[%c0_14, %c0_15] : memref<1x128xf32, #tpu.memory_space<vmem>>, vector<1x128xf32>
    %45 = vector.shape_cast %43 : vector<1x16xf32> to vector<1x1x16xf32>
    %cst_16 = arith.constant dense<0.000000e+00> : vector<1xf32>
    %46 = vector.multi_reduction <add>, %45, %cst_16 [1, 2] : vector<1x1x16xf32> to vector<1xf32>
    %47 = vector.shape_cast %46 : vector<1xf32> to vector<1x1x1xf32>
    %48 = vector.extract %47[0, 0, 0] : f32 from vector<1x1x1xf32>
    %49 = vector.broadcast %48 : f32 to vector<1x128xf32>
    %50 = arith.addf %44, %49 : vector<1x128xf32>
    %c0_17 = arith.constant 0 : index
    %c0_18 = arith.constant 0 : index
    %51 = vector.load %arg4[%c0_17, %c0_18] : memref<1x128xf32, #tpu.memory_space<vmem>>, vector<1x128xf32>
    tpu.vector_store %arg4[%c0_17, %c0_18], %50 {strides = array<i32>} : memref<1x128xf32, #tpu.memory_space<vmem>>, vector<1x128xf32>,
    return
  }
  func.func @transform_0(%arg0: i32, %arg1: i32) -> (i32, i32) {
    %c1_i32 = arith.constant 1 : i32
    %0 = arith.muli %arg0, %c1_i32 : i32
    %1 = arith.addi %0, %arg1 : i32
    %c0_i32 = arith.constant 0 : i32
    %2 = arith.minsi %1, %c0_i32 : i32
    %c0_i32_0 = arith.constant 0 : i32
    %c0_i32_1 = arith.constant 0 : i32
    return %c0_i32_0, %2 : i32, i32
  }
  func.func @transform_1(%arg0: i32, %arg1: i32) -> (i32, i32) {
    %c1_i32 = arith.constant 1 : i32
    %0 = arith.muli %arg0, %c1_i32 : i32
    %1 = arith.addi %0, %arg1 : i32
    %c0_i32 = arith.constant 0 : i32
    %2 = arith.minsi %1, %c0_i32 : i32
    %c0_i32_0 = arith.constant 0 : i32
    %c0_i32_1 = arith.constant 0 : i32
    return %c0_i32_0, %2 : i32, i32
  }
  func.func @transform_2(%arg0: i32, %arg1: i32) -> (i32, i32) {
    %c0_i32 = arith.constant 0 : i32
    %c0_i32_0 = arith.constant 0 : i32
    return %c0_i32, %arg0 : i32, i32
  }
}

</mosaic_0001>

<llo_original>
// kernel: tpu_custom_call.1
$region0: #{tpu_custom_call.1}
  #allocation0 [shape = 'u32[]', space=smem, size = 0x4, offset = 0x4, fixed_abs, tag = 'smem constant byte address 0x4 - core index']
  #allocation1 [shape = 'u32[144,128]{1,0:T(1,128)}', space=vmem, size = 0x12000, scoped, tag = 'internal scratch']
  %s0 = inlined_call_operand.hbm [shape: f32[8,16], index: 0, kind: input, shape index: {}]
  %s1 = inlined_call_operand.vmem [shape: s32[1,16], index: 1, kind: input, shape index: {}]
  %s2 = inlined_call_operand.hbm [shape: f32[1,128], index: 2, kind: output, shape index: {}]
  %s3 = sld [smem:[#allocation0]]
  $region26: #{tpu_custom_call.1} parent=0
    _
  %s5 = ssub.s32 1, %s3
  %s6 = scalar_select 0, %s5, %s3
  $region1: #{tpu_custom_call.1} parent=0
    #allocation2 [shape = 'u8[4096]{0}', space=vmem, size = 0x1000, scoped, tag = 'input window, operand 0, single buffered']
    #allocation3 [shape = 's32[1]{0}', space=sflag, size = 0x4, scoped, tag = 'scoped memory for tpu_custom_call.1']
    #allocation4 [shape = 's32[1]{0}', space=sflag, size = 0x4, scoped, tag = 'scoped memory for tpu_custom_call.1']
    #allocation5 [shape = 'u8[512]{0}', space=vmem, size = 0x400, scoped, tag = 'output window, operand 0, single buffered']
    %7 = vsyncpa [#allocation3], 0
    %8 = vsyncpa [#allocation4], 0
    // Predicated region
    $region2: #{tpu_custom_call.1} parent=1 // pred_check
      _
    $region3: #{tpu_custom_call.1} parent=1 // pred_check_branch
      %10 = sbr.rel (0) target = $region5
    $region4: #{tpu_custom_call.1} parent=1 // pred_region
      %s11 = sadd.s32 0, 0
      %p12 = scmp.lt.s32.totalorder %s11, 0
      %s13 = scalar_select %p12, %s11, 0
      %s15 = ssub.s32 128, 128
      %16 = vsyncadd [#allocation3], %s15
      %s17 = smul.addr %s13, 128
      %s18 = scalar_lea.hbm %s0, %s17
      %s20 = sshll.u32 [#allocation2], 4
      %s21 = int_to_ptr.vmem [resolvable:$true] %s20
      %23 = dma.hbm_to_vmem [thread:$0]  %s18, 128, %s21, [#allocation3]
    $region5: #{tpu_custom_call.1} parent=1 // pred_fallthru
      _
    // Predicated region
    $region6: #{tpu_custom_call.1} parent=1 // pred_check
      _
    $region7: #{tpu_custom_call.1} parent=1 // pred_check_branch
      %25 = sbr.rel (0) target = $region9
    $region8: #{tpu_custom_call.1} parent=1 // pred_region
      %s26 = sadd.s32 0, 0
      %p27 = scmp.lt.s32.totalorder %s26, 0
      %s28 = scalar_select %p27, %s26, 0
      %p29 = scmp.lt.s32.totalorder %s28, 0
      %s30 = scalar_select %p29, %s28, 0
      %s31 = scalar_lea.vmem %s1, %s30
      %s32 = sadd.s32 0, 0
      %p33 = scmp.lt.s32.totalorder %s32, 0
      %s34 = scalar_select %p33, %s32, 0
    $region9: #{tpu_custom_call.1} parent=1 // pred_fallthru
      _
    // Predicated region
    $region10: #{tpu_custom_call.1} parent=1 // pred_check
      _
    $region11: #{tpu_custom_call.1} parent=1 // pred_check_branch
      %36 = sbr.rel (0) target = $region13
    $region12: #{tpu_custom_call.1} parent=1 // pred_region
      %37 = dma.done [#allocation3], 128
    $region13: #{tpu_custom_call.1} parent=1 // pred_fallthru
      _
    %s38 = sadd.s32 0, 0
    %p39 = scmp.lt.s32.totalorder %s38, 0
    %s40 = scalar_select %p39, %s38, 0
    %p41 = scmp.lt.s32.totalorder %s40, 0
    %s42 = scalar_select %p41, %s40, 0
    %s43 = scalar_lea.vmem %s1, %s42
    %s44 = sadd.s32 0, 0
    %p45 = scmp.lt.s32.totalorder %s44, 0
    %s46 = scalar_select %p45, %s44, 0
    %s47 = sadd.s32 0, 0
    %p48 = scmp.lt.s32.totalorder %s47, 0
    %s49 = scalar_select %p48, %s47, 0
    %p50 = scmp.lt.s32.totalorder %s49, 0
    %s51 = scalar_select %p50, %s49, 0
    %s52 = scalar_lea.vmem %s1, %s51
    %s53 = sadd.s32 0, 0
    %p54 = scmp.lt.s32.totalorder %s53, 0
    %s55 = scalar_select %p54, %s53, 0
    %p56 = scmp.eq.s32.totalorder 0, 0
    // Predicated region
    $region14: #{tpu_custom_call.1} parent=1 // pred_check
      %p57 = pneg %p56
    $region15: #{tpu_custom_call.1} parent=1 // pred_check_branch
      %59 = sbr.rel (%p57) target = $region17
    $region16: #{tpu_custom_call.1} parent=1 // pred_region
      %60 = vst [vmem:[#allocation5] sm:$0x1] 0.0
    $region17: #{tpu_custom_call.1} parent=1 // pred_fallthru
      _
    %s61 = sadd.s32 0, 0
    %v62 = vld [vmem:[#allocation2] sm:$0xff]
    %v63 = vld [vmem:[%s52] sm:$0x1]
    %vm64 = vcmask 130048
    %v65 = vsel %vm64, %v62, -inf
    %v66 = vrot.slane %v65, 4
    %v67 = vmax.f32 %v65, %v66
    %v68 = vrot.slane %v67, 2
    %v69 = vmax.f32 %v67, %v68
    %v70 = vrot.slane %v69, 1
    %v71 = vmax.f32 %v69, %v70
    %v72 = vsub.f32 %v62, %v71
    %v73 = vmul.f32 %v72, 1.442695
    %v74 = vpow.pop %v73
    %v75 = vsel %vm64, %v74, 0.0
    %v76 = vrot.slane %v75, 4
    %v77 = vadd.f32 %v75, %v76
    %v78 = vrot.slane %v77, 2
    %v79 = vadd.f32 %v77, %v78
    %v80 = vrot.slane %v79, 1
    %v81 = vadd.f32 %v79, %v80
    %v82 = vlaneseq
    %v83 = vshrl.u32 %v82, 7
    %v84 = vlaneseq
    %v85 = vshrl.u32 %v84, 7
    %v86 = vsub.s32 0, %v85
    %v87 = vrot.slane %v63, %v86
    %vm88 = vcmp.eq.s32.totalorder %v83, %v87
    %v89 = vsel %vm88, %v74, 0.0
    %v90 = vsel %vm64, %v89, 0.0
    %v91 = vrot.slane %v90, 4
    %v92 = vadd.f32 %v90, %v91
    %v93 = vrot.slane %v92, 2
    %v94 = vadd.f32 %v92, %v93
    %v95 = vrot.slane %v94, 1
    %v96 = vadd.f32 %v94, %v95
    %v97 = vrcp.pop %v81
    %v98 = vmul.f32 %v81, %v97
    %v99 = vsub.f32 2.0, %v98
    %v100 = vmul.f32 %v97, %v99
    %v101 = vmul.f32 %v96, %v100
    %v102 = vadd.f32 %v101, 0.0
    %v103 = vadd.f32 %v102, 1e-10
    %v104 = vlog2.pop %v103
    %v105 = vmul.f32 %v104, 0.6931472
    %v106 = vsub.f32 0.0, %v105
    %s107 = smul.u32 %s61, 16
    %v108 = vlaneseq
    %v109 = vand.u32 %v108, 127
    %v110 = vstv %s107
    %v111 = vadd.s32 %v110, %v109
    %vm112 = vcmp.lt.s32.totalorder %v111, 16
    %v113 = vsel %vm112, %v106, 0.0
    %v114 = vld [vmem:[#allocation5] sm:$0x1]
    %vm115 = vcmask 122880
    %v116 = vsel %vm115, %v113, 0.0
    %117 = vadd.xlane.f32.xlu0 %v116
    %v118 = vpop.xlane.xlu0 %117
    %v119 = vrot.slane %v118, 4
    %v120 = vadd.f32 %v118, %v119
    %v121 = vrot.slane %v120, 2
    %v122 = vadd.f32 %v120, %v121
    %v123 = vrot.slane %v122, 1
    %v124 = vadd.f32 %v122, %v123
    %s125 = vtos %v124
    %v126 = vstv %s125
    %v127 = vadd.f32 %v114, %v126
    %128 = vst [vmem:[#allocation5] sm:$0x1] %v127
    // Predicated region
    $region18: #{tpu_custom_call.1} parent=1 // pred_check
      _
    $region19: #{tpu_custom_call.1} parent=1 // pred_check_branch
      %130 = sbr.rel (0) target = $region21
    $region20: #{tpu_custom_call.1} parent=1 // pred_region
      %s132 = ssub.s32 16, 16
      %133 = vsyncadd [#allocation4], %s132
      %s135 = sshll.u32 [#allocation5], 4
      %s136 = int_to_ptr.vmem [resolvable:$true] %s135
      %138 = dma.vmem_to_hbm [thread:$0]  %s136, 16, %s2, [#allocation4]
    $region21: #{tpu_custom_call.1} parent=1 // pred_fallthru
      _
    // Predicated region
    $region22: #{tpu_custom_call.1} parent=1 // pred_check
      _
    $region23: #{tpu_custom_call.1} parent=1 // pred_check_branch
      %140 = sbr.rel (0) target = $region25
    $region24: #{tpu_custom_call.1} parent=1 // pred_region
      %141 = dma.done [#allocation4], 16
    $region25: #{tpu_custom_call.1} parent=1 // pred_fallthru
      _
    %142 = vsyncpa [#allocation3], 1
    %143 = vsyncpa [#allocation4], 1

</llo_original>
